<compile_context>
chip_gen: v7x
topology: tpu7x:2x2x1
jax: 0.10.0
libtpu: 0.0.40
codegen_flags: <defaults>
</compile_context>

<pallas_src>
import functools
import math

import jax
import jax.numpy as jnp
from jax.experimental import pallas as pl
from jax.experimental.pallas import tpu as pltpu


def _encoder_lstm_kernel(tok_ref,       # SMEM (B, S) int32  -- scalar-prefetched tokens
                         emb_ref,       # VMEM (V, E) f32    -- embedding table (resident)
                         w_ih0_ref,     # VMEM (E, 4H) bf16  -- layer-0 input weights (pre-transposed)
                         w_ihr_ref,     # VMEM (max(L-1,1), H, 4H) bf16 -- layer>0 input weights
                         w_hh_ref,      # VMEM (L, H, 4H) bf16
                         b_ref,         # VMEM (L, 1, 4H) f32 -- b_ih + b_hh
                         out_ref,       # VMEM (1, B, H) f32  -- per-timestep output block
                         hid_out_ref,   # VMEM (L, B, H) f32  -- final hidden (flushed at last step)
                         cell_out_ref,  # VMEM (L, B, H) f32  -- final cell   (flushed at last step)
                         hid_sc,        # VMEM scratch (L, B, H) f32 -- carried h
                         cell_sc,       # VMEM scratch (L, B, H) f32 -- carried c
                         *, num_layers, batch, hidden, emb_scale):
    t = pl.program_id(0)
    H = hidden

    # PyTorch nn.LSTM default: h0 = c0 = 0 when no initial state is supplied.
    @pl.when(t == 0)
    def _():
        hid_sc[...] = jnp.zeros_like(hid_sc)
        cell_sc[...] = jnp.zeros_like(cell_sc)

    # ---- token embedding: direct row gather from the table (no one-hot matmul) ----
    rows = [emb_ref[pl.ds(tok_ref[b, t], 1), :] for b in range(batch)]     # B x (1, E)
    emb_t = jnp.concatenate(rows, axis=0) * jnp.float32(emb_scale)         # (B, E) f32
    # nn.Dropout is identity in eval/inference mode.

    # ---- single timestep of the multi-layer LSTM (PyTorch gate order i, f, g, o) ----
    x = emb_t.astype(jnp.bfloat16)
    h_new = None
    for l in range(num_layers):
        w_in = w_ih0_ref[...] if l == 0 else w_ihr_ref[l - 1]              # (E or H, 4H) bf16
        gates = (jnp.dot(x, w_in, preferred_element_type=jnp.float32)
                 + jnp.dot(hid_sc[l].astype(jnp.bfloat16), w_hh_ref[l],
                           preferred_element_type=jnp.float32)
                 + b_ref[l])                                               # (B, 4H) f32
        i_g = jax.nn.sigmoid(gates[:, 0 * H:1 * H])
        f_g = jax.nn.sigmoid(gates[:, 1 * H:2 * H])
        g_g = jnp.tanh(gates[:, 2 * H:3 * H])
        o_g = jax.nn.sigmoid(gates[:, 3 * H:4 * H])
        c_new = f_g * cell_sc[l] + i_g * g_g
        h_new = o_g * jnp.tanh(c_new)
        hid_sc[l] = h_new
        cell_sc[l] = c_new
        x = h_new.astype(jnp.bfloat16)                                     # feeds next layer

    # LSTM output at step t = last layer's hidden state.
    out_ref[0] = h_new

    @pl.when(t == pl.num_programs(0) - 1)
    def _():
        hid_out_ref[...] = hid_sc[...]
        cell_out_ref[...] = cell_sc[...]


def encoder_forward(params, inputs):
    """EncoderRNN.forward -> (output (B,S,H), hidden (L,B,H), cell (L,B,H))."""
    B, S = inputs.shape
    V, E = params["emb"].shape
    L = params["w_hh"].shape[0]
    H = params["w_hh"].shape[2]
    assert L >= 1

    tok = inputs.astype(jnp.int32)                                         # (B, S)

    # Lane-dense NN weight layout: (K, 4H) so the 4H=gate dim sits on lanes; bf16 on the MXU
    # with f32 accumulation, biases pre-summed and kept in f32.
    w_ih0_t = params["w_ih0"].T.astype(jnp.bfloat16)                       # (E, 4H)
    if L > 1:
        w_ihr_t = jnp.transpose(params["w_ihr"], (0, 2, 1)).astype(jnp.bfloat16)  # (L-1, H, 4H)
    else:
        w_ihr_t = jnp.zeros((1, H, 4 * H), jnp.bfloat16)                   # placeholder, never read
    w_hh_t = jnp.transpose(params["w_hh"], (0, 2, 1)).astype(jnp.bfloat16)  # (L, H, 4H)
    b_gates = (params["b_ih"] + params["b_hh"]).reshape(L, 1, 4 * H).astype(jnp.float32)
    emb_f32 = params["emb"].astype(jnp.float32)
    Lr = w_ihr_t.shape[0]

    kernel = functools.partial(_encoder_lstm_kernel, num_layers=L, batch=B,
                               hidden=H, emb_scale=math.sqrt(E))

    grid_spec = pltpu.PrefetchScalarGridSpec(
        num_scalar_prefetch=1,                  # tokens -> SMEM
        grid=(S,),                              # one grid step per timestep (recurrence)
        in_specs=[
            pl.BlockSpec((V, E), lambda t, tok: (0, 0)),            # emb table, resident
            pl.BlockSpec((E, 4 * H), lambda t, tok: (0, 0)),        # w_ih layer 0
            pl.BlockSpec((Lr, H, 4 * H), lambda t, tok: (0, 0, 0)),  # w_ih layers > 0
            pl.BlockSpec((L, H, 4 * H), lambda t, tok: (0, 0, 0)),   # w_hh
            pl.BlockSpec((L, 1, 4 * H), lambda t, tok: (0, 0, 0)),   # biases
        ],
        out_specs=(
            pl.BlockSpec((1, B, H), lambda t, tok: (t, 0, 0)),       # streamed per-step output
            pl.BlockSpec((L, B, H), lambda t, tok: (0, 0, 0)),       # final hidden (resident)
            pl.BlockSpec((L, B, H), lambda t, tok: (0, 0, 0)),       # final cell (resident)
        ),
        scratch_shapes=[pltpu.VMEM((L, B, H), jnp.float32),          # carried h
                        pltpu.VMEM((L, B, H), jnp.float32)],         # carried c
    )

    out_tbh, hidden, cell = pl.pallas_call(
        kernel,
        grid_spec=grid_spec,
        out_shape=(
            jax.ShapeDtypeStruct((S, B, H), jnp.float32),
            jax.ShapeDtypeStruct((L, B, H), jnp.float32),
            jax.ShapeDtypeStruct((L, B, H), jnp.float32),
        ),
        compiler_params=pltpu.CompilerParams(
            dimension_semantics=("arbitrary",)),   # time steps are a true data dependence
    )(tok, emb_f32, w_ih0_t, w_ihr_t, w_hh_t, b_gates)

    # batch_first layout for the caller (layout glue outside the hot kernel).
    output = jnp.transpose(out_tbh, (1, 0, 2))                             # (B, S, H)
    return output, hidden, cell


# --------------------------- pure-JAX reference (for validation) ---------------------------
def reference_forward(params, inputs):
    B, S = inputs.shape
    V, E = params["emb"].shape
    L = params["w_hh"].shape[0]
    H = params["w_hh"].shape[2]

    emb = params["emb"][inputs.reshape(-1)].reshape(B, S, E) * math.sqrt(E)
    # dropout: identity in eval mode

    h = [jnp.zeros((B, H), jnp.float32) for _ in range(L)]
    c = [jnp.zeros((B, H), jnp.float32) for _ in range(L)]
    outs = []
    for t in range(S):
        x = emb[:, t, :]
        for l in range(L):
            w_ih = params["w_ih0"] if l == 0 else params["w_ihr"][l - 1]
            gates = (x @ w_ih.T + h[l] @ params["w_hh"][l].T
                     + params["b_ih"][l] + params["b_hh"][l])
            i = jax.nn.sigmoid(gates[:, :H])
            f = jax.nn.sigmoid(gates[:, H:2 * H])
            g = jnp.tanh(gates[:, 2 * H:3 * H])
            o = jax.nn.sigmoid(gates[:, 3 * H:])
            c[l] = f * c[l] + i * g
            h[l] = o * jnp.tanh(c[l])
            x = h[l]
        outs.append(x)
    output = jnp.stack(outs, axis=1)                                       # (B, S, H)
    return output, jnp.stack(h), jnp.stack(c)


def init_params(key, V, E, H, L):
    ks = jax.random.split(key, 6)
    s = 0.1
    params = {
        "emb":   jax.random.normal(ks[0], (V, E), jnp.float32) * s,
        "w_ih0": jax.random.normal(ks[1], (4 * H, E), jnp.float32) * s,    # layer 0
        "w_hh":  jax.random.normal(ks[2], (L, 4 * H, H), jnp.float32) * s,
        "b_ih":  jax.random.normal(ks[3], (L, 4 * H), jnp.float32) * s,
        "b_hh":  jax.random.normal(ks[4], (L, 4 * H), jnp.float32) * s,
    }
    if L > 1:
        params["w_ihr"] = jax.random.normal(ks[5], (L - 1, 4 * H, H), jnp.float32) * s
    else:
        params["w_ihr"] = jnp.zeros((0, 4 * H, H), jnp.float32)
    return params


if __name__ == "__main__":
    B, S, V, E, H, L = 2, 8, 32, 16, 32, 2

    key = jax.random.PRNGKey(0)
    kp, kt = jax.random.split(key)
    params = init_params(kp, V, E, H, L)
    inputs = jax.random.randint(kt, (B, S), 0, V, dtype=jnp.int32)

    output, hidden, cell = encoder_forward(params, inputs)
    jax.block_until_ready((output, hidden, cell))

    with jax.default_matmul_precision("highest"):
        r_out, r_hid, r_cell = reference_forward(params, inputs)

    # bf16 weights on the MXU (f32 accumulation) -> slightly looser tolerance than pure f32.
    assert jnp.allclose(output, r_out, atol=2e-2, rtol=2e-2)
    assert jnp.allclose(hidden, r_hid, atol=2e-2, rtol=2e-2)
    assert jnp.allclose(cell, r_cell, atol=2e-2, rtol=2e-2)

    print("KERNEL_OK")
</pallas_src>

<mosaic_0001>
module attributes {stable_mosaic.version = 11 : i64} {
  func.func @_encoder_lstm_kernel(%arg0: i32, %arg1: memref<2x8xi32, #tpu.memory_space<smem>>, %arg2: memref<32x16xf32, #tpu.memory_space<vmem>>, %arg3: memref<16x128xbf16, #tpu.memory_space<vmem>>, %arg4: memref<1x32x128xbf16, #tpu.memory_space<vmem>>, %arg5: memref<2x32x128xbf16, #tpu.memory_space<vmem>>, %arg6: memref<2x1x128xf32, #tpu.memory_space<vmem>>, %arg7: memref<1x2x32xf32, #tpu.memory_space<vmem>>, %arg8: memref<2x2x32xf32, #tpu.memory_space<vmem>>, %arg9: memref<2x2x32xf32, #tpu.memory_space<vmem>>, %arg10: memref<2x2x32xf32, #tpu.memory_space<vmem>>, %arg11: memref<2x2x32xf32, #tpu.memory_space<vmem>>) attributes {dimension_semantics = [#tpu.dimension_semantics<arbitrary>], iteration_bounds = array<i64: 8>, scalar_prefetch = 1 : i64, scratch_operands = 2 : i64, tpu.core_type = #tpu.core_type<tc>, window_params = [{pipeline_mode = #tpu.pipeline_mode<synchronous>, transform_indices = @transform_0, window_bounds = array<i64: 32, 16>}, {pipeline_mode = #tpu.pipeline_mode<synchronous>, transform_indices = @transform_1, window_bounds = array<i64: 16, 128>}, {pipeline_mode = #tpu.pipeline_mode<synchronous>, transform_indices = @transform_2, window_bounds = array<i64: 1, 32, 128>}, {pipeline_mode = #tpu.pipeline_mode<synchronous>, transform_indices = @transform_3, window_bounds = array<i64: 2, 32, 128>}, {pipeline_mode = #tpu.pipeline_mode<synchronous>, transform_indices = @transform_4, window_bounds = array<i64: 2, 1, 128>}, {transform_indices = @transform_5, window_bounds = array<i64: 1, 2, 32>}, {pipeline_mode = #tpu.pipeline_mode<synchronous>, transform_indices = @transform_6, window_bounds = array<i64: 2, 2, 32>}, {pipeline_mode = #tpu.pipeline_mode<synchronous>, transform_indices = @transform_7, window_bounds = array<i64: 2, 2, 32>}]} {
    %c0_i32 = arith.constant 0 : i32
    %0 = arith.cmpi eq, %arg0, %c0_i32 : i32
    %1 = arith.extui %0 : i1 to i32
    %c0_i32_0 = arith.constant 0 : i32
    %2 = arith.cmpi ne, %1, %c0_i32_0 : i32
    scf.if %2 {
      %cst_58 = arith.constant 0.000000e+00 : f32
      %115 = vector.broadcast %cst_58 : f32 to vector<2x2x32xf32>
      %c0_59 = arith.constant 0 : index
      %c0_60 = arith.constant 0 : index
      %c0_61 = arith.constant 0 : index
      %116 = vector.load %arg10[%c0_59, %c0_60, %c0_61] : memref<2x2x32xf32, #tpu.memory_space<vmem>>, vector<2x2x32xf32>
      tpu.vector_store %arg10[%c0_59, %c0_60, %c0_61], %115 {strides = array<i32>} : memref<2x2x32xf32, #tpu.memory_space<vmem>>, vector<2x2x32xf32>,
      %cst_62 = arith.constant 0.000000e+00 : f32
      %117 = vector.broadcast %cst_62 : f32 to vector<2x2x32xf32>
      %c0_63 = arith.constant 0 : index
      %c0_64 = arith.constant 0 : index
      %c0_65 = arith.constant 0 : index
      %118 = vector.load %arg11[%c0_63, %c0_64, %c0_65] : memref<2x2x32xf32, #tpu.memory_space<vmem>>, vector<2x2x32xf32>
      tpu.vector_store %arg11[%c0_63, %c0_64, %c0_65], %117 {strides = array<i32>} : memref<2x2x32xf32, #tpu.memory_space<vmem>>, vector<2x2x32xf32>,
    } else {
    }
    %c0 = arith.constant 0 : index
    %3 = arith.index_cast %arg0 : i32 to index
    %4 = memref.load %arg1[%c0, %3] : memref<2x8xi32, #tpu.memory_space<smem>>
    %5 = arith.index_cast %4 : i32 to index
    %c0_1 = arith.constant 0 : index
    %6 = vector.load %arg2[%5, %c0_1] : memref<32x16xf32, #tpu.memory_space<vmem>>, vector<1x16xf32>
    %c1 = arith.constant 1 : index
    %7 = arith.index_cast %arg0 : i32 to index
    %8 = memref.load %arg1[%c1, %7] : memref<2x8xi32, #tpu.memory_space<smem>>
    %9 = arith.index_cast %8 : i32 to index
    %c0_2 = arith.constant 0 : index
    %10 = vector.load %arg2[%9, %c0_2] : memref<32x16xf32, #tpu.memory_space<vmem>>, vector<1x16xf32>
    %11 = tpu.concatenate %6, %10 in 0 : vector<1x16xf32>, vector<1x16xf32> -> vector<2x16xf32>
    %cst = arith.constant 4.000000e+00 : f32
    %12 = vector.broadcast %cst : f32 to vector<2x16xf32>
    %13 = arith.mulf %11, %12 : vector<2x16xf32>
    %14 = arith.truncf %13 : vector<2x16xf32> to vector<2x16xbf16>
    %c0_3 = arith.constant 0 : index
    %c0_4 = arith.constant 0 : index
    %15 = vector.load %arg3[%c0_3, %c0_4] : memref<16x128xbf16, #tpu.memory_space<vmem>>, vector<16x128xbf16>
    %cst_5 = arith.constant dense<0.000000e+00> : vector<2x128xf32>
    %16 = tpu.matmul %14, %15, %cst_5 {dimension_numbers = #tpu.dot_dimension_numbers<[1], [0], [0], [1], [0, 0, 1, 1], [], []>} : vector<2x16xbf16>, vector<16x128xbf16>, vector<2x128xf32> -> vector<2x128xf32>
    %c0_6 = arith.constant 0 : index
    %c0_7 = arith.constant 0 : index
    %c0_8 = arith.constant 0 : index
    %17 = vector.load %arg10[%c0_6, %c0_7, %c0_8] : memref<2x2x32xf32, #tpu.memory_space<vmem>>, vector<1x2x32xf32>
    %18 = vector.shape_cast %17 : vector<1x2x32xf32> to vector<2x32xf32>
    %19 = arith.truncf %18 : vector<2x32xf32> to vector<2x32xbf16>
    %c0_9 = arith.constant 0 : index
    %c0_10 = arith.constant 0 : index
    %c0_11 = arith.constant 0 : index
    %20 = vector.load %arg5[%c0_9, %c0_10, %c0_11] : memref<2x32x128xbf16, #tpu.memory_space<vmem>>, vector<1x32x128xbf16>
    %21 = vector.shape_cast %20 : vector<1x32x128xbf16> to vector<32x128xbf16>
    %cst_12 = arith.constant dense<0.000000e+00> : vector<2x128xf32>
    %22 = tpu.matmul %19, %21, %cst_12 {dimension_numbers = #tpu.dot_dimension_numbers<[1], [0], [0], [1], [0, 0, 1, 1], [], []>} : vector<2x32xbf16>, vector<32x128xbf16>, vector<2x128xf32> -> vector<2x128xf32>
    %23 = arith.addf %16, %22 : vector<2x128xf32>
    %c0_13 = arith.constant 0 : index
    %c0_14 = arith.constant 0 : index
    %c0_15 = arith.constant 0 : index
    %24 = vector.load %arg6[%c0_13, %c0_14, %c0_15] : memref<2x1x128xf32, #tpu.memory_space<vmem>>, vector<1x1x128xf32>
    %25 = vector.shape_cast %24 : vector<1x1x128xf32> to vector<1x128xf32>
    %26 = vector.broadcast %25 : vector<1x128xf32> to vector<2x128xf32>
    %27 = arith.addf %23, %26 : vector<2x128xf32>
    %28 = vector.extract_strided_slice %27 {offsets = [0, 0], sizes = [2, 32], strides = [1, 1]} : vector<2x128xf32> to vector<2x32xf32>
    %29 = arith.negf %28 : vector<2x32xf32>
    %30 = math.exp %29 : vector<2x32xf32>
    %cst_16 = arith.constant 1.000000e+00 : f32
    %31 = vector.broadcast %cst_16 : f32 to vector<2x32xf32>
    %32 = arith.addf %31, %30 : vector<2x32xf32>
    %33 = arith.divf %31, %32 : vector<2x32xf32>
    %34 = vector.extract_strided_slice %27 {offsets = [0, 32], sizes = [2, 32], strides = [1, 1]} : vector<2x128xf32> to vector<2x32xf32>
    %35 = arith.negf %34 : vector<2x32xf32>
    %36 = math.exp %35 : vector<2x32xf32>
    %cst_17 = arith.constant 1.000000e+00 : f32
    %37 = vector.broadcast %cst_17 : f32 to vector<2x32xf32>
    %38 = arith.addf %37, %36 : vector<2x32xf32>
    %39 = arith.divf %37, %38 : vector<2x32xf32>
    %40 = vector.extract_strided_slice %27 {offsets = [0, 64], sizes = [2, 32], strides = [1, 1]} : vector<2x128xf32> to vector<2x32xf32>
    %41 = math.tanh %40 : vector<2x32xf32>
    %42 = vector.extract_strided_slice %27 {offsets = [0, 96], sizes = [2, 32], strides = [1, 1]} : vector<2x128xf32> to vector<2x32xf32>
    %43 = arith.negf %42 : vector<2x32xf32>
    %44 = math.exp %43 : vector<2x32xf32>
    %cst_18 = arith.constant 1.000000e+00 : f32
    %45 = vector.broadcast %cst_18 : f32 to vector<2x32xf32>
    %46 = arith.addf %45, %44 : vector<2x32xf32>
    %47 = arith.divf %45, %46 : vector<2x32xf32>
    %c0_19 = arith.constant 0 : index
    %c0_20 = arith.constant 0 : index
    %c0_21 = arith.constant 0 : index
    %48 = vector.load %arg11[%c0_19, %c0_20, %c0_21] : memref<2x2x32xf32, #tpu.memory_space<vmem>>, vector<1x2x32xf32>
    %49 = vector.shape_cast %48 : vector<1x2x32xf32> to vector<2x32xf32>
    %50 = arith.mulf %39, %49 : vector<2x32xf32>
    %51 = arith.mulf %33, %41 : vector<2x32xf32>
    %52 = arith.addf %50, %51 : vector<2x32xf32>
    %53 = math.tanh %52 : vector<2x32xf32>
    %54 = arith.mulf %47, %53 : vector<2x32xf32>
    %c0_22 = arith.constant 0 : index
    %c0_23 = arith.constant 0 : index
    %c0_24 = arith.constant 0 : index
    %55 = vector.load %arg10[%c0_22, %c0_23, %c0_24] : memref<2x2x32xf32, #tpu.memory_space<vmem>>, vector<1x2x32xf32>
    %56 = vector.shape_cast %55 : vector<1x2x32xf32> to vector<2x32xf32>
    %57 = vector.shape_cast %54 : vector<2x32xf32> to vector<1x2x32xf32>
    tpu.vector_store %arg10[%c0_22, %c0_23, %c0_24], %57 {strides = array<i32>} : memref<2x2x32xf32, #tpu.memory_space<vmem>>, vector<1x2x32xf32>,
    %c0_25 = arith.constant 0 : index
    %c0_26 = arith.constant 0 : index
    %c0_27 = arith.constant 0 : index
    %58 = vector.load %arg11[%c0_25, %c0_26, %c0_27] : memref<2x2x32xf32, #tpu.memory_space<vmem>>, vector<1x2x32xf32>
    %59 = vector.shape_cast %58 : vector<1x2x32xf32> to vector<2x32xf32>
    %60 = vector.shape_cast %52 : vector<2x32xf32> to vector<1x2x32xf32>
    tpu.vector_store %arg11[%c0_25, %c0_26, %c0_27], %60 {strides = array<i32>} : memref<2x2x32xf32, #tpu.memory_space<vmem>>, vector<1x2x32xf32>,
    %61 = arith.truncf %54 : vector<2x32xf32> to vector<2x32xbf16>
    %c0_28 = arith.constant 0 : index
    %c0_29 = arith.constant 0 : index
    %c0_30 = arith.constant 0 : index
    %62 = vector.load %arg4[%c0_28, %c0_29, %c0_30] : memref<1x32x128xbf16, #tpu.memory_space<vmem>>, vector<1x32x128xbf16>
    %63 = vector.shape_cast %62 : vector<1x32x128xbf16> to vector<32x128xbf16>
    %cst_31 = arith.constant dense<0.000000e+00> : vector<2x128xf32>
    %64 = tpu.matmul %61, %63, %cst_31 {dimension_numbers = #tpu.dot_dimension_numbers<[1], [0], [0], [1], [0, 0, 1, 1], [], []>} : vector<2x32xbf16>, vector<32x128xbf16>, vector<2x128xf32> -> vector<2x128xf32>
    %c1_32 = arith.constant 1 : index
    %c0_33 = arith.constant 0 : index
    %c0_34 = arith.constant 0 : index
    %65 = vector.load %arg10[%c1_32, %c0_33, %c0_34] : memref<2x2x32xf32, #tpu.memory_space<vmem>>, vector<1x2x32xf32>
    %66 = vector.shape_cast %65 : vector<1x2x32xf32> to vector<2x32xf32>
    %67 = arith.truncf %66 : vector<2x32xf32> to vector<2x32xbf16>
    %c1_35 = arith.constant 1 : index
    %c0_36 = arith.constant 0 : index
    %c0_37 = arith.constant 0 : index
    %68 = vector.load %arg5[%c1_35, %c0_36, %c0_37] : memref<2x32x128xbf16, #tpu.memory_space<vmem>>, vector<1x32x128xbf16>
    %69 = vector.shape_cast %68 : vector<1x32x128xbf16> to vector<32x128xbf16>
    %cst_38 = arith.constant dense<0.000000e+00> : vector<2x128xf32>
    %70 = tpu.matmul %67, %69, %cst_38 {dimension_numbers = #tpu.dot_dimension_numbers<[1], [0], [0], [1], [0, 0, 1, 1], [], []>} : vector<2x32xbf16>, vector<32x128xbf16>, vector<2x128xf32> -> vector<2x128xf32>
    %71 = arith.addf %64, %70 : vector<2x128xf32>
    %c1_39 = arith.constant 1 : index
    %c0_40 = arith.constant 0 : index
    %c0_41 = arith.constant 0 : index
    %72 = vector.load %arg6[%c1_39, %c0_40, %c0_41] : memref<2x1x128xf32, #tpu.memory_space<vmem>>, vector<1x1x128xf32>
    %73 = vector.shape_cast %72 : vector<1x1x128xf32> to vector<1x128xf32>
    %74 = vector.broadcast %73 : vector<1x128xf32> to vector<2x128xf32>
    %75 = arith.addf %71, %74 : vector<2x128xf32>
    %76 = vector.extract_strided_slice %75 {offsets = [0, 0], sizes = [2, 32], strides = [1, 1]} : vector<2x128xf32> to vector<2x32xf32>
    %77 = arith.negf %76 : vector<2x32xf32>
    %78 = math.exp %77 : vector<2x32xf32>
    %cst_42 = arith.constant 1.000000e+00 : f32
    %79 = vector.broadcast %cst_42 : f32 to vector<2x32xf32>
    %80 = arith.addf %79, %78 : vector<2x32xf32>
    %81 = arith.divf %79, %80 : vector<2x32xf32>
    %82 = vector.extract_strided_slice %75 {offsets = [0, 32], sizes = [2, 32], strides = [1, 1]} : vector<2x128xf32> to vector<2x32xf32>
    %83 = arith.negf %82 : vector<2x32xf32>
    %84 = math.exp %83 : vector<2x32xf32>
    %cst_43 = arith.constant 1.000000e+00 : f32
    %85 = vector.broadcast %cst_43 : f32 to vector<2x32xf32>
    %86 = arith.addf %85, %84 : vector<2x32xf32>
    %87 = arith.divf %85, %86 : vector<2x32xf32>
    %88 = vector.extract_strided_slice %75 {offsets = [0, 64], sizes = [2, 32], strides = [1, 1]} : vector<2x128xf32> to vector<2x32xf32>
    %89 = math.tanh %88 : vector<2x32xf32>
    %90 = vector.extract_strided_slice %75 {offsets = [0, 96], sizes = [2, 32], strides = [1, 1]} : vector<2x128xf32> to vector<2x32xf32>
    %91 = arith.negf %90 : vector<2x32xf32>
    %92 = math.exp %91 : vector<2x32xf32>
    %cst_44 = arith.constant 1.000000e+00 : f32
    %93 = vector.broadcast %cst_44 : f32 to vector<2x32xf32>
    %94 = arith.addf %93, %92 : vector<2x32xf32>
    %95 = arith.divf %93, %94 : vector<2x32xf32>
    %c1_45 = arith.constant 1 : index
    %c0_46 = arith.constant 0 : index
    %c0_47 = arith.constant 0 : index
    %96 = vector.load %arg11[%c1_45, %c0_46, %c0_47] : memref<2x2x32xf32, #tpu.memory_space<vmem>>, vector<1x2x32xf32>
    %97 = vector.shape_cast %96 : vector<1x2x32xf32> to vector<2x32xf32>
    %98 = arith.mulf %87, %97 : vector<2x32xf32>
    %99 = arith.mulf %81, %89 : vector<2x32xf32>
    %100 = arith.addf %98, %99 : vector<2x32xf32>
    %101 = math.tanh %100 : vector<2x32xf32>
    %102 = arith.mulf %95, %101 : vector<2x32xf32>
    %c1_48 = arith.constant 1 : index
    %c0_49 = arith.constant 0 : index
    %c0_50 = arith.constant 0 : index
    %103 = vector.load %arg10[%c1_48, %c0_49, %c0_50] : memref<2x2x32xf32, #tpu.memory_space<vmem>>, vector<1x2x32xf32>
    %104 = vector.shape_cast %103 : vector<1x2x32xf32> to vector<2x32xf32>
    %105 = vector.shape_cast %102 : vector<2x32xf32> to vector<1x2x32xf32>
    tpu.vector_store %arg10[%c1_48, %c0_49, %c0_50], %105 {strides = array<i32>} : memref<2x2x32xf32, #tpu.memory_space<vmem>>, vector<1x2x32xf32>,
    %c1_51 = arith.constant 1 : index
    %c0_52 = arith.constant 0 : index
    %c0_53 = arith.constant 0 : index
    %106 = vector.load %arg11[%c1_51, %c0_52, %c0_53] : memref<2x2x32xf32, #tpu.memory_space<vmem>>, vector<1x2x32xf32>
    %107 = vector.shape_cast %106 : vector<1x2x32xf32> to vector<2x32xf32>
    %108 = vector.shape_cast %100 : vector<2x32xf32> to vector<1x2x32xf32>
    tpu.vector_store %arg11[%c1_51, %c0_52, %c0_53], %108 {strides = array<i32>} : memref<2x2x32xf32, #tpu.memory_space<vmem>>, vector<1x2x32xf32>,
    %c0_54 = arith.constant 0 : index
    %c0_55 = arith.constant 0 : index
    %c0_56 = arith.constant 0 : index
    %109 = vector.load %arg7[%c0_54, %c0_55, %c0_56] : memref<1x2x32xf32, #tpu.memory_space<vmem>>, vector<1x2x32xf32>
    %110 = vector.shape_cast %109 : vector<1x2x32xf32> to vector<2x32xf32>
    %111 = vector.shape_cast %102 : vector<2x32xf32> to vector<1x2x32xf32>
    tpu.vector_store %arg7[%c0_54, %c0_55, %c0_56], %111 {strides = array<i32>} : memref<1x2x32xf32, #tpu.memory_space<vmem>>, vector<1x2x32xf32>,
    %c7_i32 = arith.constant 7 : i32
    %112 = arith.cmpi eq, %arg0, %c7_i32 : i32
    %113 = arith.extui %112 : i1 to i32
    %c0_i32_57 = arith.constant 0 : i32
    %114 = arith.cmpi ne, %113, %c0_i32_57 : i32
    scf.if %114 {
      %c0_58 = arith.constant 0 : index
      %c0_59 = arith.constant 0 : index
      %c0_60 = arith.constant 0 : index
      %115 = vector.load %arg10[%c0_58, %c0_59, %c0_60] : memref<2x2x32xf32, #tpu.memory_space<vmem>>, vector<2x2x32xf32>
      %c0_61 = arith.constant 0 : index
      %c0_62 = arith.constant 0 : index
      %c0_63 = arith.constant 0 : index
      %116 = vector.load %arg8[%c0_61, %c0_62, %c0_63] : memref<2x2x32xf32, #tpu.memory_space<vmem>>, vector<2x2x32xf32>
      tpu.vector_store %arg8[%c0_61, %c0_62, %c0_63], %115 {strides = array<i32>} : memref<2x2x32xf32, #tpu.memory_space<vmem>>, vector<2x2x32xf32>,
      %c0_64 = arith.constant 0 : index
      %c0_65 = arith.constant 0 : index
      %c0_66 = arith.constant 0 : index
      %117 = vector.load %arg11[%c0_64, %c0_65, %c0_66] : memref<2x2x32xf32, #tpu.memory_space<vmem>>, vector<2x2x32xf32>
      %c0_67 = arith.constant 0 : index
      %c0_68 = arith.constant 0 : index
      %c0_69 = arith.constant 0 : index
      %118 = vector.load %arg9[%c0_67, %c0_68, %c0_69] : memref<2x2x32xf32, #tpu.memory_space<vmem>>, vector<2x2x32xf32>
      tpu.vector_store %arg9[%c0_67, %c0_68, %c0_69], %117 {strides = array<i32>} : memref<2x2x32xf32, #tpu.memory_space<vmem>>, vector<2x2x32xf32>,
    } else {
    }
    return
  }
  func.func @transform_0(%arg0: i32, %arg1: memref<2x8xi32, #tpu.memory_space<smem>>) -> (i32, i32) {
    %c0_i32 = arith.constant 0 : i32
    %c0_i32_0 = arith.constant 0 : i32
    %c0_i32_1 = arith.constant 0 : i32
    return %c0_i32, %c0_i32_0 : i32, i32
  }
  func.func @transform_1(%arg0: i32, %arg1: memref<2x8xi32, #tpu.memory_space<smem>>) -> (i32, i32) {
    %c0_i32 = arith.constant 0 : i32
    %c0_i32_0 = arith.constant 0 : i32
    %c0_i32_1 = arith.constant 0 : i32
    return %c0_i32, %c0_i32_0 : i32, i32
  }
  func.func @transform_2(%arg0: i32, %arg1: memref<2x8xi32, #tpu.memory_space<smem>>) -> (i32, i32, i32) {
    %c0_i32 = arith.constant 0 : i32
    %c0_i32_0 = arith.constant 0 : i32
    %c0_i32_1 = arith.constant 0 : i32
    %c0_i32_2 = arith.constant 0 : i32
    return %c0_i32, %c0_i32_0, %c0_i32_1 : i32, i32, i32
  }
  func.func @transform_3(%arg0: i32, %arg1: memref<2x8xi32, #tpu.memory_space<smem>>) -> (i32, i32, i32) {
    %c0_i32 = arith.constant 0 : i32
    %c0_i32_0 = arith.constant 0 : i32
    %c0_i32_1 = arith.constant 0 : i32
    %c0_i32_2 = arith.constant 0 : i32
    return %c0_i32, %c0_i32_0, %c0_i32_1 : i32, i32, i32
  }
  func.func @transform_4(%arg0: i32, %arg1: memref<2x8xi32, #tpu.memory_space<smem>>) -> (i32, i32, i32) {
    %c0_i32 = arith.constant 0 : i32
    %c0_i32_0 = arith.constant 0 : i32
    %c0_i32_1 = arith.constant 0 : i32
    %c0_i32_2 = arith.constant 0 : i32
    return %c0_i32, %c0_i32_0, %c0_i32_1 : i32, i32, i32
  }
  func.func @transform_5(%arg0: i32, %arg1: memref<2x8xi32, #tpu.memory_space<smem>>) -> (i32, i32, i32) {
    %c0_i32 = arith.constant 0 : i32
    %c0_i32_0 = arith.constant 0 : i32
    %c0_i32_1 = arith.constant 0 : i32
    return %arg0, %c0_i32, %c0_i32_0 : i32, i32, i32
  }
  func.func @transform_6(%arg0: i32, %arg1: memref<2x8xi32, #tpu.memory_space<smem>>) -> (i32, i32, i32) {
    %c0_i32 = arith.constant 0 : i32
    %c0_i32_0 = arith.constant 0 : i32
    %c0_i32_1 = arith.constant 0 : i32
    %c0_i32_2 = arith.constant 0 : i32
    return %c0_i32, %c0_i32_0, %c0_i32_1 : i32, i32, i32
  }
  func.func @transform_7(%arg0: i32, %arg1: memref<2x8xi32, #tpu.memory_space<smem>>) -> (i32, i32, i32) {
    %c0_i32 = arith.constant 0 : i32
    %c0_i32_0 = arith.constant 0 : i32
    %c0_i32_1 = arith.constant 0 : i32
    %c0_i32_2 = arith.constant 0 : i32
    return %c0_i32, %c0_i32_0, %c0_i32_1 : i32, i32, i32
  }
}

</mosaic_0001>

<llo_original>
// kernel: tpu_custom_call.1
$region0: #{tpu_custom_call.1}
  #allocation0 [shape = 'u32[]', space=smem, size = 0x4, offset = 0x4, fixed_abs, tag = 'smem constant byte address 0x4 - core index']
  #allocation1 [shape = 'u32[144,128]{1,0:T(1,128)}', space=vmem, size = 0x12000, scoped, tag = 'internal scratch']
  #allocation2 [shape = 'f32[2,2,32]{2,1,0:T(2,128)}', space=vmem, size = 0x800, scoped, tag = 'scratch operand']
  #allocation3 [shape = 'f32[2,2,32]{2,1,0:T(2,128)}', space=vmem, size = 0x800, scoped, tag = 'scratch operand']
  #allocation4 [shape = 's32[1]{0}', space=sflag, size = 0x4, scoped, tag = 'scoped memory for tpu_custom_call.1']
  #allocation5 [shape = 'u8[1024]{0}', space=smem, size = 0x400, scoped, tag = 'prefetched SMEM operand 0']
  %s0 = inlined_call_operand.vmem [shape: s32[2,8], index: 0, kind: input, shape index: {}]
  %s1 = inlined_call_operand.vmem [shape: f32[32,16], index: 1, kind: input, shape index: {}]
  %s2 = inlined_call_operand.vmem [shape: bf16[16,128], index: 2, kind: input, shape index: {}]
  %s3 = inlined_call_operand.vmem [shape: bf16[1,32,128], index: 3, kind: input, shape index: {}]
  %s4 = inlined_call_operand.vmem [shape: bf16[2,32,128], index: 4, kind: input, shape index: {}]
  %s5 = inlined_call_operand.vmem [shape: f32[2,1,128], index: 5, kind: input, shape index: {}]
  %s6 = inlined_call_operand.hbm [shape: f32[8,2,32], index: 6, kind: output, shape index: {0}]
  %s7 = inlined_call_operand.hbm [shape: f32[2,2,32], index: 7, kind: output, shape index: {1}]
  %s8 = inlined_call_operand.hbm [shape: f32[2,2,32], index: 8, kind: output, shape index: {2}]
  %9 = xla_tuple %s6, %s7, %s8
  %s10 = sld [smem:[#allocation0]]
  $region77: #{tpu_custom_call.1} parent=0
    _
  %s12 = ssub.s32 1, %s10
  %s13 = scalar_select 0, %s12, %s10
  %s14 = sshll.u32 %s0, 4
  %s15 = int_to_ptr.vmem [resolvable:$true] %s14
  %17 = dma.vmem_to_smem %s15, 32, [#allocation5], [#allocation4]
  %18 = dma.done [#allocation4], 32
  %19 = sfence
  $region1: #{tpu_custom_call.1} parent=0
    #allocation6 [shape = 'u8[2048]{0}', space=vmem, size = 0x800, scoped, tag = 'output window, operand 0']
    #allocation7 [shape = 's32[2]{0}', space=sflag, size = 0x8, scoped, tag = 'scoped memory for tpu_custom_call.1']
    #allocation8 [shape = 'u8[2048]{0}', space=vmem, size = 0x800, scoped, tag = 'output window, operand 1, single buffered']
    #allocation9 [shape = 's32[1]{0}', space=sflag, size = 0x4, scoped, tag = 'scoped memory for tpu_custom_call.1']
    #allocation10 [shape = 'u8[2048]{0}', space=vmem, size = 0x800, scoped, tag = 'output window, operand 2, single buffered']
    %20 = vsyncpa [#allocation7], 0
    %s21 = scalar_lea.sflag [#allocation7], 1
    %22 = vsyncpa %s21, 0
    %23 = vsyncpa [#allocation9], 0
    loop: start=0, step=1, limit=10
    $region2: #{tpu_custom_call.1} parent=1 // loop_pre_header
      _
    $region3: #{tpu_custom_call.1} parent=1 // loop_header
      %s25 = sphi 0, %s29
      %p26 = scmp.ge.s32.totalorder %s25, 10
      %s33 = sphi 0, %s33
      %s35 = sphi 0, %s33
      %s36 = sphi 0, %s35
      %s50 = sphi 0, %s36
      %s54 = sphi 0, %s54
      %s56 = sphi 0, %s54
      %s57 = sphi 0, %s56
      %s71 = sphi 0, %s57
      %s75 = sphi 0, %s75
      %s77 = sphi 0, %s75
      %s78 = sphi 0, %s77
      %s92 = sphi 0, %s78
      %s96 = sphi 0, %s96
      %s98 = sphi 0, %s96
      %s99 = sphi 0, %s98
      %s113 = sphi 0, %s99
      %s117 = sphi 0, %s117
      %s119 = sphi 0, %s117
      %s120 = sphi 0, %s119
      %s134 = sphi 0, %s120
      %s140 = sphi 0, %s142
      %s143 = sphi 0, %s140
      %s144 = sphi 0, %s143
      %s160 = sphi 0, %s144
      %s164 = sphi 0, %s164
      %s166 = sphi 0, %s164
      %s167 = sphi 0, %s166
      %s181 = sphi 0, %s167
      %s185 = sphi 0, %s185
      %s187 = sphi 0, %s185
      %s188 = sphi 0, %s187
      %s202 = sphi 0, %s188
    $region4: #{tpu_custom_call.1} parent=1 // loop_header_branch
      %28 = sbr.rel (%p26) target = $region8
    $region5: #{tpu_custom_call.1} parent=1 // loop_body
      %s30 = ssub.s32 %s25, 1
      %s31 = ssub.s32 %s25, 2
      %s32 = sadd.s32 %s25, 1
      %s34 = sadd.s32 %s33, 1
      %p37 = scmp.eq.s32.totalorder %s25, 7
      %p38 = scmp.ne.s32.totalorder %s33, %s35
      %p39 = scmp.eq.s32.totalorder %s25, 0
      %p40 = por %p38, %p39
      %p41 = scmp.ne.s32.totalorder %s33, %s35
      %p42 = scmp.eq.s32.totalorder %s30, 7
      %p43 = por %p41, %p42
      %p44 = scmp.ne.s32.totalorder %s35, %s36
      %p45 = scmp.eq.s32.totalorder %s30, 0
      %p46 = por %p44, %p45
      %p47 = scmp.ne.s32.totalorder %s35, %s36
      %p48 = scmp.eq.s32.totalorder %s31, 7
      %p49 = por %p47, %p48
      %p51 = scmp.ne.s32.totalorder %s36, %s50
      %p52 = scmp.eq.s32.totalorder %s31, 0
      %p53 = por %p51, %p52
      %s55 = sadd.s32 %s54, 1
      %p58 = scmp.eq.s32.totalorder %s25, 7
      %p59 = scmp.ne.s32.totalorder %s54, %s56
      %p60 = scmp.eq.s32.totalorder %s25, 0
      %p61 = por %p59, %p60
      %p62 = scmp.ne.s32.totalorder %s54, %s56
      %p63 = scmp.eq.s32.totalorder %s30, 7
      %p64 = por %p62, %p63
      %p65 = scmp.ne.s32.totalorder %s56, %s57
      %p66 = scmp.eq.s32.totalorder %s30, 0
      %p67 = por %p65, %p66
      %p68 = scmp.ne.s32.totalorder %s56, %s57
      %p69 = scmp.eq.s32.totalorder %s31, 7
      %p70 = por %p68, %p69
      %p72 = scmp.ne.s32.totalorder %s57, %s71
      %p73 = scmp.eq.s32.totalorder %s31, 0
      %p74 = por %p72, %p73
      %s76 = sadd.s32 %s75, 1
      %p79 = scmp.eq.s32.totalorder %s25, 7
      %p80 = scmp.ne.s32.totalorder %s75, %s77
      %p81 = scmp.eq.s32.totalorder %s25, 0
      %p82 = por %p80, %p81
      %p83 = scmp.ne.s32.totalorder %s75, %s77
      %p84 = scmp.eq.s32.totalorder %s30, 7
      %p85 = por %p83, %p84
      %p86 = scmp.ne.s32.totalorder %s77, %s78
      %p87 = scmp.eq.s32.totalorder %s30, 0
      %p88 = por %p86, %p87
      %p89 = scmp.ne.s32.totalorder %s77, %s78
      %p90 = scmp.eq.s32.totalorder %s31, 7
      %p91 = por %p89, %p90
      %p93 = scmp.ne.s32.totalorder %s78, %s92
      %p94 = scmp.eq.s32.totalorder %s31, 0
      %p95 = por %p93, %p94
      %s97 = sadd.s32 %s96, 1
      %p100 = scmp.eq.s32.totalorder %s25, 7
      %p101 = scmp.ne.s32.totalorder %s96, %s98
      %p102 = scmp.eq.s32.totalorder %s25, 0
      %p103 = por %p101, %p102
      %p104 = scmp.ne.s32.totalorder %s96, %s98
      %p105 = scmp.eq.s32.totalorder %s30, 7
      %p106 = por %p104, %p105
      %p107 = scmp.ne.s32.totalorder %s98, %s99
      %p108 = scmp.eq.s32.totalorder %s30, 0
      %p109 = por %p107, %p108
      %p110 = scmp.ne.s32.totalorder %s98, %s99
      %p111 = scmp.eq.s32.totalorder %s31, 7
      %p112 = por %p110, %p111
      %p114 = scmp.ne.s32.totalorder %s99, %s113
      %p115 = scmp.eq.s32.totalorder %s31, 0
      %p116 = por %p114, %p115
      %s118 = sadd.s32 %s117, 1
      %p121 = scmp.eq.s32.totalorder %s25, 7
      %p122 = scmp.ne.s32.totalorder %s117, %s119
      %p123 = scmp.eq.s32.totalorder %s25, 0
      %p124 = por %p122, %p123
      %p125 = scmp.ne.s32.totalorder %s117, %s119
      %p126 = scmp.eq.s32.totalorder %s30, 7
      %p127 = por %p125, %p126
      %p128 = scmp.ne.s32.totalorder %s119, %s120
      %p129 = scmp.eq.s32.totalorder %s30, 0
      %p130 = por %p128, %p129
      %p131 = scmp.ne.s32.totalorder %s119, %s120
      %p132 = scmp.eq.s32.totalorder %s31, 7
      %p133 = por %p131, %p132
      %p135 = scmp.ne.s32.totalorder %s120, %s134
      %p136 = scmp.eq.s32.totalorder %s31, 0
      %p137 = por %p135, %p136
      %s138 = ssub.s32 %s25, %s32
      %p139 = scmp.eq.s32.totalorder %s138, 0
      %s141 = sadd.s32 %s140, 1
      %s142 = scalar_select %p139, %s140, %s141
      %p145 = pneg %p139
      %p146 = scmp.eq.s32.totalorder %s25, 7
      %p147 = por %p145, %p146
      %p148 = scmp.ne.s32.totalorder %s140, %s143
      %p149 = scmp.eq.s32.totalorder %s25, 0
      %p150 = por %p148, %p149
      %p151 = scmp.ne.s32.totalorder %s140, %s143
      %p152 = scmp.eq.s32.totalorder %s30, 7
      %p153 = por %p151, %p152
      %p154 = scmp.ne.s32.totalorder %s143, %s144
      %p155 = scmp.eq.s32.totalorder %s30, 0
      %p156 = por %p154, %p155
      %p157 = scmp.ne.s32.totalorder %s143, %s144
      %p158 = scmp.eq.s32.totalorder %s31, 7
      %p159 = por %p157, %p158
      %p161 = scmp.ne.s32.totalorder %s144, %s160
      %p162 = scmp.eq.s32.totalorder %s31, 0
      %p163 = por %p161, %p162
      %s165 = sadd.s32 %s164, 1
      %p168 = scmp.eq.s32.totalorder %s25, 7
      %p169 = scmp.ne.s32.totalorder %s164, %s166
      %p170 = scmp.eq.s32.totalorder %s25, 0
      %p171 = por %p169, %p170
      %p172 = scmp.ne.s32.totalorder %s164, %s166
      %p173 = scmp.eq.s32.totalorder %s30, 7
      %p174 = por %p172, %p173
      %p175 = scmp.ne.s32.totalorder %s166, %s167
      %p176 = scmp.eq.s32.totalorder %s30, 0
      %p177 = por %p175, %p176
      %p178 = scmp.ne.s32.totalorder %s166, %s167
      %p179 = scmp.eq.s32.totalorder %s31, 7
      %p180 = por %p178, %p179
      %p182 = scmp.ne.s32.totalorder %s167, %s181
      %p183 = scmp.eq.s32.totalorder %s31, 0
      %p184 = por %p182, %p183
      %s186 = sadd.s32 %s185, 1
      %p189 = scmp.eq.s32.totalorder %s25, 7
      %p190 = scmp.ne.s32.totalorder %s185, %s187
      %p191 = scmp.eq.s32.totalorder %s25, 0
      %p192 = por %p190, %p191
      %p193 = scmp.ne.s32.totalorder %s185, %s187
      %p194 = scmp.eq.s32.totalorder %s30, 7
      %p195 = por %p193, %p194
      %p196 = scmp.ne.s32.totalorder %s187, %s188
      %p197 = scmp.eq.s32.totalorder %s30, 0
      %p198 = por %p196, %p197
      %p199 = scmp.ne.s32.totalorder %s187, %s188
      %p200 = scmp.eq.s32.totalorder %s31, 7
      %p201 = por %p199, %p200
      %p203 = scmp.ne.s32.totalorder %s188, %s202
      %p204 = scmp.eq.s32.totalorder %s31, 0
      %p205 = por %p203, %p204
      %p206 = scmp.le.s32.totalorder 1, %s25
      %p207 = scmp.lt.s32.totalorder %s25, 9
      %p208 = pnand %p206, %p207
      %p209 = pneg %p208
      // Predicated region
      $region9: #{tpu_custom_call.1} parent=5 // pred_check
        _
      $region10: #{tpu_custom_call.1} parent=5 // pred_check_branch
        %211 = sbr.rel (%p208) target = $region12
      $region11: #{tpu_custom_call.1} parent=5 // pred_region
        %s212 = ssub.s32 %s25, 1
        // Predicated region
        $region13: #{tpu_custom_call.1} parent=11 // pred_check
          %p213 = pneg %p46
        $region14: #{tpu_custom_call.1} parent=11 // pred_check_branch
          %215 = sbr.rel (%p213) target = $region16
        $region15: #{tpu_custom_call.1} parent=11 // pred_region
          _
        $region16: #{tpu_custom_call.1} parent=11 // pred_fallthru
          _
        // Predicated region
        $region17: #{tpu_custom_call.1} parent=11 // pred_check
          %p216 = pneg %p67
        $region18: #{tpu_custom_call.1} parent=11 // pred_check_branch
          %218 = sbr.rel (%p216) target = $region20
        $region19: #{tpu_custom_call.1} parent=11 // pred_region
          _
        $region20: #{tpu_custom_call.1} parent=11 // pred_fallthru
          _
        // Predicated region
        $region21: #{tpu_custom_call.1} parent=11 // pred_check
          %p219 = pneg %p88
        $region22: #{tpu_custom_call.1} parent=11 // pred_check_branch
          %221 = sbr.rel (%p219) target = $region24
        $region23: #{tpu_custom_call.1} parent=11 // pred_region
          _
        $region24: #{tpu_custom_call.1} parent=11 // pred_fallthru
          _
        // Predicated region
        $region25: #{tpu_custom_call.1} parent=11 // pred_check
          %p222 = pneg %p109
        $region26: #{tpu_custom_call.1} parent=11 // pred_check_branch
          %224 = sbr.rel (%p222) target = $region28
        $region27: #{tpu_custom_call.1} parent=11 // pred_region
          _
        $region28: #{tpu_custom_call.1} parent=11 // pred_fallthru
          _
        // Predicated region
        $region29: #{tpu_custom_call.1} parent=11 // pred_check
          %p225 = pneg %p130
        $region30: #{tpu_custom_call.1} parent=11 // pred_check_branch
          %227 = sbr.rel (%p225) target = $region32
        $region31: #{tpu_custom_call.1} parent=11 // pred_region
          _
        $region32: #{tpu_custom_call.1} parent=11 // pred_fallthru
          _
      $region12: #{tpu_custom_call.1} parent=5 // pred_fallthru
        _
      %p228 = scmp.lt.s32.totalorder %s25, 8
      // Predicated region
      $region33: #{tpu_custom_call.1} parent=5 // pred_check
        %p229 = pneg %p228
      $region34: #{tpu_custom_call.1} parent=5 // pred_check_branch
        %231 = sbr.rel (%p229) target = $region36
      $region35: #{tpu_custom_call.1} parent=5 // pred_region
        _
      $region36: #{tpu_custom_call.1} parent=5 // pred_fallthru
        _
      %p232 = scmp.le.s32.totalorder 1, %s25
      %p233 = scmp.lt.s32.totalorder %s25, 9
      %p234 = pnand %p232, %p233
      %p235 = pneg %p234
      // Predicated region
      $region37: #{tpu_custom_call.1} parent=5 // pred_check
        _
      $region38: #{tpu_custom_call.1} parent=5 // pred_check_branch
        %237 = sbr.rel (%p234) target = $region40
      $region39: #{tpu_custom_call.1} parent=5 // pred_region
        %s238 = ssub.s32 %s25, 1
        %p239 = pneg %p46
        %p240 = pneg %p43
        %p241 = pneg %p67
        %p242 = pneg %p64
        %p243 = pneg %p88
        %p244 = pneg %p85
        %p245 = pneg %p109
        %p246 = pneg %p106
        %p247 = pneg %p130
        %p248 = pneg %p127
        %p249 = pneg %p156
        %p250 = pneg %p153
        %s251 = sand.u32 %s143, 1
        %s252 = scalar_lea.sflag [#allocation7], %s251
        %s253 = sand.u32 %s143, 1
        %s254 = smul.addr %s253, 2
        %s255 = scalar_lea.vmem [#allocation6], %s254
        %p256 = pneg %p177
        %p257 = pneg %p174
        %p258 = pneg %p198
        %p259 = pneg %p195
        %p261 = scmp.eq.s32.totalorder %s30, 0
        // Predicated region
        $region41: #{tpu_custom_call.1} parent=39 // pred_check
          %p262 = pneg %p261
        $region42: #{tpu_custom_call.1} parent=39 // pred_check_branch
          %264 = sbr.rel (%p262) target = $region44
        $region43: #{tpu_custom_call.1} parent=39 // pred_region
          %vm265 = vcmask 254976
          %266 = vst.msk [vmem:[#allocation2] sm:$0x3] %vm265, 0.0
          %267 = vst.msk [vmem:[#allocation2 + $0x2] sm:$0x3] %vm265, 0.0
          %268 = vst.msk [vmem:[#allocation3] sm:$0x3] %vm265, 0.0
          %269 = vst.msk [vmem:[#allocation3 + $0x2] sm:$0x3] %vm265, 0.0
        $region44: #{tpu_custom_call.1} parent=39 // pred_fallthru
          _
        %s270 = sld [smem:[#allocation5 + %s30]]
        %s271 = scalar_lea.vmem %s1, %s270
        %v272 = vld [vmem:[%s271] sm:$0x1]
        %s273 = sshra.s32 %s30, 7
        %s274 = sand.u32 %s30, 127
        %s275 = sadd.s32 %s273, 1
        %s276 = smul.u32 %s275, 128
        %s277 = sshra.s32 %s30, 7
        %s278 = sand.u32 %s30, 127
        %s279 = sadd.s32 %s276, %s278
        %s280 = sld [smem:[#allocation5 + %s279]]
        %s281 = scalar_lea.vmem %s1, %s280
        %v282 = vld [vmem:[%s281] sm:$0x1]
        %v284 = vrot.slane %v282, 7
        %vm286 = vcmask 1040384
        %v287 = vsel %vm286, %v272, %v284
        %v288 = vmul.f32 %v287, 4.0
        %v289 = vpack.c.bf16 %v288, %v288
        %v290 = vld [vmem:[%s2] sm:$0xf]
        %v291 = vld [vmem:[%s2 + $0x4] sm:$0xf]
        %v292 = vld [vmem:[#allocation2] sm:$0x3]
        %v293 = vpack.c.bf16 %v292, %v292
        %v294 = vld [vmem:[%s4] sm:$0xf]
        %v295 = vld [vmem:[%s4 + $0x4] sm:$0xf]
        %v296 = vld [vmem:[%s4 + $0x8] sm:$0xf]
        %v297 = vld [vmem:[%s4 + $0xc] sm:$0xf]
        %v302 = vunpack.c.l.b16 %v294
        %v303 = vunpack.c.l.b16 %v295
        %v304 = vunpack.c.l.b16 %v296
        %v305 = vunpack.c.l.b16 %v297
        %v306 = vpack.c.b16 %v303, %v302
        %v307 = vpack.c.b16 %v305, %v304
        %vm310 = vcmask 261120
        %v312 = vsel %vm310, %v293, 0
        %314 = vmatprep.subr.bf16.mxu0 0
        %315 = vmatpush1.bf16.msra.mxu0 %v306
        %316 = vmatprep.subr.bf16.mxu0 0
        %317 = vmatpush1.bf16.msra.mxu0 %v307
        %318 = vmatprep.subr.bf16.mxu0 0
        %319 = vmatpush1.bf16.msra.mxu0 0
        %320 = vmatprep.subr.bf16.mxu0 0
        %321 = vmatpush1.bf16.msra.mxu0 0
        %322 = vmatprep.subr.bf16.mxu0 0
        %323 = vmatpush1.bf16.msra.mxu0 0
        %324 = vmatprep.subr.bf16.mxu0 0
        %325 = vmatpush1.bf16.msra.mxu0 0
        %326 = vmatprep.subr.bf16.mxu0 0
        %327 = vmatpush1.bf16.msra.mxu0 0
        %328 = vmatprep.subr.bf16.mxu0 0
        %329 = vmatpush1.bf16.msra.mxu0 0
        %330 = vmatprep.subr.bf16.mxu0 0
        %331 = vmatpush1.bf16.msra.mxu0 0
        %332 = vmatprep.subr.bf16.mxu0 0
        %333 = vmatpush1.bf16.msra.mxu0 0
        %334 = vmatprep.subr.bf16.mxu0 0
        %335 = vmatpush1.bf16.msra.mxu0 0
        %336 = vmatprep.subr.bf16.mxu0 0
        %337 = vmatpush1.bf16.msra.mxu0 0
        %338 = vmatprep.subr.bf16.mxu0 0
        %339 = vmatpush1.bf16.msra.mxu0 0
        %340 = vmatprep.subr.bf16.mxu0 0
        %341 = vmatpush1.bf16.msra.mxu0 0
        %342 = vmatprep.subr.bf16.mxu0 0
        %343 = vmatpush1.bf16.msra.mxu0 0
        %344 = vmatprep.subr.bf16.mxu0 0
        %345 = vmatpush1.bf16.msra.mxu0 0
        %346 = vmatprep.mubr.bf16.mxu0 0
        %347 = vmatmul.mubr.bf16.gmra.mrb[0].mxu0 %v312
        %v348 = vpop.f32.mrb[0].mxu0
        %v349 = vadd.f32 0.0, %v348
        %v350 = vpop.f32.mrb[0].mxu0
        %v351 = vpop.f32.mrb[0].mxu0
        %v352 = vpop.f32.mrb[0].mxu0
        %353 = vdwg.mxu0
        %v356 = vunpack.c.l.b16 %v290
        %v357 = vunpack.c.l.b16 %v291
        %v358 = vpack.c.b16 %v357, %v356
        %vm360 = vcmask 130048
        %v362 = vsel %vm360, %v289, 0
        %364 = vmatprep.subr.bf16.mxu0 0
        %365 = vmatpush1.bf16.msra.mxu0 %v358
        %366 = vmatprep.subr.bf16.mxu0 0
        %367 = vmatpush1.bf16.msra.mxu0 0
        %368 = vmatprep.subr.bf16.mxu0 0
        %369 = vmatpush1.bf16.msra.mxu0 0
        %370 = vmatprep.subr.bf16.mxu0 0
        %371 = vmatpush1.bf16.msra.mxu0 0
        %372 = vmatprep.subr.bf16.mxu0 0
        %373 = vmatpush1.bf16.msra.mxu0 0
        %374 = vmatprep.subr.bf16.mxu0 0
        %375 = vmatpush1.bf16.msra.mxu0 0
        %376 = vmatprep.subr.bf16.mxu0 0
        %377 = vmatpush1.bf16.msra.mxu0 0
        %378 = vmatprep.subr.bf16.mxu0 0
        %379 = vmatpush1.bf16.msra.mxu0 0
        %380 = vmatprep.subr.bf16.mxu0 0
        %381 = vmatpush1.bf16.msra.mxu0 0
        %382 = vmatprep.subr.bf16.mxu0 0
        %383 = vmatpush1.bf16.msra.mxu0 0
        %384 = vmatprep.subr.bf16.mxu0 0
        %385 = vmatpush1.bf16.msra.mxu0 0
        %386 = vmatprep.subr.bf16.mxu0 0
        %387 = vmatpush1.bf16.msra.mxu0 0
        %388 = vmatprep.subr.bf16.mxu0 0
        %389 = vmatpush1.bf16.msra.mxu0 0
        %390 = vmatprep.subr.bf16.mxu0 0
        %391 = vmatpush1.bf16.msra.mxu0 0
        %392 = vmatprep.subr.bf16.mxu0 0
        %393 = vmatpush1.bf16.msra.mxu0 0
        %394 = vmatprep.subr.bf16.mxu0 0
        %395 = vmatpush1.bf16.msra.mxu0 0
        %396 = vmatprep.mubr.bf16.mxu0 0
        %397 = vmatmul.mubr.bf16.gmra.mrb[0].mxu0 %v362
        %v398 = vpop.f32.mrb[0].mxu0
        %v399 = vadd.f32 %v349, %v398
        %v400 = vpop.f32.mrb[0].mxu0
        %v401 = vpop.f32.mrb[0].mxu0
        %v402 = vpop.f32.mrb[0].mxu0
        %403 = vdwg.mxu0
        %v404 = vld [vmem:[%s5] sm:$0x1]
        %v406 = vlaneseq
        %v407 = vshrl.u32 %v406, 7
        %v408 = vsub.s32 0, %v407
        %v409 = vrot.slane %v404, %v408
        %v411 = vadd.f32 %v399, %v409
        %v412 = vxor.u32 %v411, 2147483648
        %v413 = vmul.f32 %v412, 1.442695
        %v414 = vpow.pop %v413
        %v415 = vadd.f32 %v414, 1.0
        %v416 = vrcp.pop %v415
        %v417 = vmul.f32 1.0, %v416
        %v418 = vtanh.pop %v411
        %v419 = vld [vmem:[#allocation3] sm:$0x3]
        %421 = vrot.lane.b32.xlu0 %v419, 32
        %v422 = vpop.permute.xlu0 %421
        %v424 = vmul.f32 %v417, %v422
        %426 = vrot.lane.b32.xlu0 %v418, 64
        %v427 = vpop.permute.xlu0 %426
        %v429 = vmul.f32 %v417, %v427
        %431 = vrot.lane.b32.xlu0 %v429, 32
        %v432 = vpop.permute.xlu0 %431
        %v434 = vadd.f32 %v424, %v432
        %v435 = vtanh.pop %v434
        %437 = vrot.lane.b32.xlu0 %v435, 64
        %v438 = vpop.permute.xlu0 %437
        %v440 = vmul.f32 %v417, %v438
        %442 = vrot.lane.b32.xlu0 %v440, 32
        %v443 = vpop.permute.xlu0 %442
        %vm445 = vcmask 254976
        %446 = vst.msk [vmem:[#allocation2] sm:$0x3] %vm445, %v443
        %448 = vrot.lane.b32.xlu0 %v434, 96
        %v449 = vpop.permute.xlu0 %448
        %451 = vst.msk [vmem:[#allocation3] sm:$0x3] %vm445, %v449
        %v452 = vpack.c.bf16 %v440, %v440
        %v453 = vld [vmem:[%s3] sm:$0xf]
        %v454 = vld [vmem:[%s3 + $0x4] sm:$0xf]
        %v455 = vld [vmem:[%s3 + $0x8] sm:$0xf]
        %v456 = vld [vmem:[%s3 + $0xc] sm:$0xf]
        %s457 = scalar_lea.vmem [#allocation2], 2
        %v458 = vld [vmem:[%s457] sm:$0x3]
        %v459 = vpack.c.bf16 %v458, %v458
        %s460 = scalar_lea.vmem %s4, 16
        %v461 = vld [vmem:[%s460] sm:$0xf]
        %v462 = vld [vmem:[%s460 + $0x4] sm:$0xf]
        %v463 = vld [vmem:[%s460 + $0x8] sm:$0xf]
        %v464 = vld [vmem:[%s460 + $0xc] sm:$0xf]
        %v469 = vunpack.c.l.b16 %v461
        %v470 = vunpack.c.l.b16 %v462
        %v471 = vunpack.c.l.b16 %v463
        %v472 = vunpack.c.l.b16 %v464
        %v473 = vpack.c.b16 %v470, %v469
        %v474 = vpack.c.b16 %v472, %v471
        %v478 = vsel %vm310, %v459, 0
        %480 = vmatprep.subr.bf16.mxu0 0
        %481 = vmatpush1.bf16.msra.mxu0 %v473
        %482 = vmatprep.subr.bf16.mxu0 0
        %483 = vmatpush1.bf16.msra.mxu0 %v474
        %484 = vmatprep.subr.bf16.mxu0 0
        %485 = vmatpush1.bf16.msra.mxu0 0
        %486 = vmatprep.subr.bf16.mxu0 0
        %487 = vmatpush1.bf16.msra.mxu0 0
        %488 = vmatprep.subr.bf16.mxu0 0
        %489 = vmatpush1.bf16.msra.mxu0 0
        %490 = vmatprep.subr.bf16.mxu0 0
        %491 = vmatpush1.bf16.msra.mxu0 0
        %492 = vmatprep.subr.bf16.mxu0 0
        %493 = vmatpush1.bf16.msra.mxu0 0
        %494 = vmatprep.subr.bf16.mxu0 0
        %495 = vmatpush1.bf16.msra.mxu0 0
        %496 = vmatprep.subr.bf16.mxu0 0
        %497 = vmatpush1.bf16.msra.mxu0 0
        %498 = vmatprep.subr.bf16.mxu0 0
        %499 = vmatpush1.bf16.msra.mxu0 0
        %500 = vmatprep.subr.bf16.mxu0 0
        %501 = vmatpush1.bf16.msra.mxu0 0
        %502 = vmatprep.subr.bf16.mxu0 0
        %503 = vmatpush1.bf16.msra.mxu0 0
        %504 = vmatprep.subr.bf16.mxu0 0
        %505 = vmatpush1.bf16.msra.mxu0 0
        %506 = vmatprep.subr.bf16.mxu0 0
        %507 = vmatpush1.bf16.msra.mxu0 0
        %508 = vmatprep.subr.bf16.mxu0 0
        %509 = vmatpush1.bf16.msra.mxu0 0
        %510 = vmatprep.subr.bf16.mxu0 0
        %511 = vmatpush1.bf16.msra.mxu0 0
        %512 = vmatprep.mubr.bf16.mxu0 0
        %513 = vmatmul.mubr.bf16.gmra.mrb[0].mxu0 %v478
        %v514 = vpop.f32.mrb[0].mxu0
        %v515 = vadd.f32 0.0, %v514
        %v516 = vpop.f32.mrb[0].mxu0
        %v517 = vpop.f32.mrb[0].mxu0
        %v518 = vpop.f32.mrb[0].mxu0
        %519 = vdwg.mxu0
        %521 = vrot.lane.b32.xlu0 %v452, 32
        %v522 = vpop.permute.xlu0 %521
        %v527 = vunpack.c.l.b16 %v453
        %v528 = vunpack.c.l.b16 %v454
        %v529 = vunpack.c.l.b16 %v455
        %v530 = vunpack.c.l.b16 %v456
        %v531 = vpack.c.b16 %v528, %v527
        %v532 = vpack.c.b16 %v530, %v529
        %v536 = vsel %vm310, %v522, 0
        %538 = vmatprep.subr.bf16.mxu0 0
        %539 = vmatpush1.bf16.msra.mxu0 %v531
        %540 = vmatprep.subr.bf16.mxu0 0
        %541 = vmatpush1.bf16.msra.mxu0 %v532
        %542 = vmatprep.subr.bf16.mxu0 0
        %543 = vmatpush1.bf16.msra.mxu0 0
        %544 = vmatprep.subr.bf16.mxu0 0
        %545 = vmatpush1.bf16.msra.mxu0 0
        %546 = vmatprep.subr.bf16.mxu0 0
        %547 = vmatpush1.bf16.msra.mxu0 0
        %548 = vmatprep.subr.bf16.mxu0 0
        %549 = vmatpush1.bf16.msra.mxu0 0
        %550 = vmatprep.subr.bf16.mxu0 0
        %551 = vmatpush1.bf16.msra.mxu0 0
        %552 = vmatprep.subr.bf16.mxu0 0
        %553 = vmatpush1.bf16.msra.mxu0 0
        %554 = vmatprep.subr.bf16.mxu0 0
        %555 = vmatpush1.bf16.msra.mxu0 0
        %556 = vmatprep.subr.bf16.mxu0 0
        %557 = vmatpush1.bf16.msra.mxu0 0
        %558 = vmatprep.subr.bf16.mxu0 0
        %559 = vmatpush1.bf16.msra.mxu0 0
        %560 = vmatprep.subr.bf16.mxu0 0
        %561 = vmatpush1.bf16.msra.mxu0 0
        %562 = vmatprep.subr.bf16.mxu0 0
        %563 = vmatpush1.bf16.msra.mxu0 0
        %564 = vmatprep.subr.bf16.mxu0 0
        %565 = vmatpush1.bf16.msra.mxu0 0
        %566 = vmatprep.subr.bf16.mxu0 0
        %567 = vmatpush1.bf16.msra.mxu0 0
        %568 = vmatprep.subr.bf16.mxu0 0
        %569 = vmatpush1.bf16.msra.mxu0 0
        %570 = vmatprep.mubr.bf16.mxu0 0
        %571 = vmatmul.mubr.bf16.gmra.mrb[0].mxu0 %v536
        %v572 = vpop.f32.mrb[0].mxu0
        %v573 = vadd.f32 %v515, %v572
        %v574 = vpop.f32.mrb[0].mxu0
        %v575 = vpop.f32.mrb[0].mxu0
        %v576 = vpop.f32.mrb[0].mxu0
        %577 = vdwg.mxu0
        %s578 = scalar_lea.vmem %s5, 1
        %v579 = vld [vmem:[%s578] sm:$0x1]
        %v581 = vlaneseq
        %v582 = vshrl.u32 %v581, 7
        %v583 = vsub.s32 0, %v582
        %v584 = vrot.slane %v579, %v583
        %v586 = vadd.f32 %v573, %v584
        %v587 = vxor.u32 %v586, 2147483648
        %v588 = vmul.f32 %v587, 1.442695
        %v589 = vpow.pop %v588
        %v590 = vadd.f32 %v589, 1.0
        %v591 = vrcp.pop %v590
        %v592 = vmul.f32 1.0, %v591
        %v593 = vtanh.pop %v586
        %s594 = scalar_lea.vmem [#allocation3], 2
        %v595 = vld [vmem:[%s594] sm:$0x3]
        %597 = vrot.lane.b32.xlu0 %v595, 32
        %v598 = vpop.permute.xlu0 %597
        %v600 = vmul.f32 %v592, %v598
        %602 = vrot.lane.b32.xlu0 %v593, 64
        %v603 = vpop.permute.xlu0 %602
        %v605 = vmul.f32 %v592, %v603
        %607 = vrot.lane.b32.xlu0 %v605, 32
        %v608 = vpop.permute.xlu0 %607
        %v610 = vadd.f32 %v600, %v608
        %v611 = vtanh.pop %v610
        %613 = vrot.lane.b32.xlu0 %v611, 64
        %v614 = vpop.permute.xlu0 %613
        %v616 = vmul.f32 %v592, %v614
        %618 = vrot.lane.b32.xlu0 %v616, 32
        %v619 = vpop.permute.xlu0 %618
        %621 = vst.msk [vmem:[%s457] sm:$0x3] %vm445, %v619
        %623 = vrot.lane.b32.xlu0 %v610, 96
        %v624 = vpop.permute.xlu0 %623
        %626 = vst.msk [vmem:[%s594] sm:$0x3] %vm445, %v624
        %627 = vst.msk [vmem:[%s255] sm:$0x3] %vm445, %v619
        %p628 = scmp.eq.s32.totalorder %s30, 7
        // Predicated region
        $region45: #{tpu_custom_call.1} parent=39 // pred_check
          %p629 = pneg %p628
        $region46: #{tpu_custom_call.1} parent=39 // pred_check_branch
          %631 = sbr.rel (%p629) target = $region48
        $region47: #{tpu_custom_call.1} parent=39 // pred_region
          %v632 = vld [vmem:[#allocation2] sm:$0x3]
          %v633 = vld [vmem:[#allocation2 + $0x2] sm:$0x3]
          %634 = vst.msk [vmem:[#allocation8] sm:$0x3] %vm445, %v632
          %635 = vst.msk [vmem:[#allocation8 + $0x2] sm:$0x3] %vm445, %v633
          %v636 = vld [vmem:[#allocation3] sm:$0x3]
          %v637 = vld [vmem:[#allocation3 + $0x2] sm:$0x3]
          %638 = vst.msk [vmem:[#allocation10] sm:$0x3] %vm445, %v636
          %639 = vst.msk [vmem:[#allocation10 + $0x2] sm:$0x3] %vm445, %v637
        $region48: #{tpu_custom_call.1} parent=39 // pred_fallthru
          _
        %s640 = sand.u32 %s143, 1
        %s641 = scalar_lea.sflag [#allocation7], %s640
        %s642 = sand.u32 %s143, 1
        %s643 = smul.addr %s642, 2
        %s644 = scalar_lea.vmem [#allocation6], %s643
        // Predicated region
        $region49: #{tpu_custom_call.1} parent=39 // pred_check
          %p645 = pneg %p153
        $region50: #{tpu_custom_call.1} parent=39 // pred_check_branch
          %647 = sbr.rel (%p645) target = $region52
        $region51: #{tpu_custom_call.1} parent=39 // pred_region
          %s649 = ssub.s32 32, 32
          %650 = vsyncadd %s641, %s649
          %s651 = smul.addr %s30, 32
          %s652 = scalar_lea.hbm %s6, %s651
          %s654 = sshll.u32 %s644, 4
          %s655 = int_to_ptr.vmem [resolvable:$true] %s654
          %657 = dma.vmem_to_hbm [thread:$0]  %s655, 32, %s652, %s641
        $region52: #{tpu_custom_call.1} parent=39 // pred_fallthru
          _
        // Predicated region
        $region53: #{tpu_custom_call.1} parent=39 // pred_check
          %p658 = pneg %p174
        $region54: #{tpu_custom_call.1} parent=39 // pred_check_branch
          %660 = sbr.rel (%p658) target = $region56
        $region55: #{tpu_custom_call.1} parent=39 // pred_region
          %s662 = ssub.s32 64, 64
          %663 = vsyncadd [#allocation9], %s662
          %s664 = sshll.u32 [#allocation8], 4
          %s665 = int_to_ptr.vmem [resolvable:$true] %s664
          %670 = dma.vmem_to_hbm [thread:$0]  %s665, 64, %s7, [#allocation9], 32, 32, 2
        $region56: #{tpu_custom_call.1} parent=39 // pred_fallthru
          _
        // Predicated region
        $region57: #{tpu_custom_call.1} parent=39 // pred_check
          %p671 = pneg %p195
        $region58: #{tpu_custom_call.1} parent=39 // pred_check_branch
          %673 = sbr.rel (%p671) target = $region60
        $region59: #{tpu_custom_call.1} parent=39 // pred_region
          %s675 = ssub.s32 64, 64
          %676 = vsyncadd [#allocation9], %s675
          %s677 = sshll.u32 [#allocation10], 4
          %s678 = int_to_ptr.vmem [resolvable:$true] %s677
          %683 = dma.vmem_to_hbm [thread:$0]  %s678, 64, %s8, [#allocation9], 32, 32, 2
        $region60: #{tpu_custom_call.1} parent=39 // pred_fallthru
          _
        // Predicated region
        $region61: #{tpu_custom_call.1} parent=39 // pred_check
          %p684 = pneg %p174
        $region62: #{tpu_custom_call.1} parent=39 // pred_check_branch
          %686 = sbr.rel (%p684) target = $region64
        $region63: #{tpu_custom_call.1} parent=39 // pred_region
          %687 = dma.done [#allocation9], 64
        $region64: #{tpu_custom_call.1} parent=39 // pred_fallthru
          _
        // Predicated region
        $region65: #{tpu_custom_call.1} parent=39 // pred_check
          %p688 = pneg %p195
        $region66: #{tpu_custom_call.1} parent=39 // pred_check_branch
          %690 = sbr.rel (%p688) target = $region68
        $region67: #{tpu_custom_call.1} parent=39 // pred_region
          %691 = dma.done [#allocation9], 64
        $region68: #{tpu_custom_call.1} parent=39 // pred_fallthru
          _
      $region40: #{tpu_custom_call.1} parent=5 // pred_fallthru
        _
      %p692 = scmp.le.s32.totalorder 2, %s25
      // Predicated region
      $region69: #{tpu_custom_call.1} parent=5 // pred_check
        %p693 = pneg %p692
      $region70: #{tpu_custom_call.1} parent=5 // pred_check_branch
        %695 = sbr.rel (%p693) target = $region72
      $region71: #{tpu_custom_call.1} parent=5 // pred_region
        %s696 = ssub.s32 %s25, 2
        // Predicated region
        $region73: #{tpu_custom_call.1} parent=71 // pred_check
          %p697 = pneg %p159
        $region74: #{tpu_custom_call.1} parent=71 // pred_check_branch
          %699 = sbr.rel (%p697) target = $region76
        $region75: #{tpu_custom_call.1} parent=71 // pred_region
          %s700 = sand.u32 %s144, 1
          %s701 = scalar_lea.sflag [#allocation7], %s700
          %s702 = sand.u32 %s144, 1
          %s703 = smul.addr %s702, 2
          %s704 = scalar_lea.vmem [#allocation6], %s703
          %705 = dma.done %s701, 32
        $region76: #{tpu_custom_call.1} parent=71 // pred_fallthru
          _
      $region72: #{tpu_custom_call.1} parent=5 // pred_fallthru
        _
    $region6: #{tpu_custom_call.1} parent=1 // loop_footer
      %s29 = sadd.s32 1, %s25
    $region7: #{tpu_custom_call.1} parent=1 // loop_footer_branch
      %24 = sbr.rel target = $region3
    $region8: #{tpu_custom_call.1} parent=1 // loop_exit
      _
    %706 = vsyncpa [#allocation7], 1
    %s707 = scalar_lea.sflag [#allocation7], 1
    %708 = vsyncpa %s707, 1
    %709 = vsyncpa [#allocation9], 1

</llo_original>
